<compile_context>
chip_gen: v7x
topology: tpu7x:2x2x1
jax: 0.10.0
libtpu: 0.0.40
codegen_flags: <defaults>
</compile_context>

<pallas_src>
import jax
import jax.numpy as jnp
from jax.experimental import pallas as pl
from jax.experimental.pallas import tpu as pltpu


def _weighted_sum_kernel(feats_ref, w_ref, b_ref, out_ref):
    # feats_ref: (Bt, N, F) VMEM   w_ref: (F, 1) VMEM   b_ref: (1,) SMEM
    # out_ref  : (Bt, F)    VMEM
    x = feats_ref[...]                              # (Bt, N, F), native dtype
    bt, n, f = x.shape
    x2 = x.reshape(bt * n, f)                       # merge leading dims (layout-friendly)

    # One MXU matmul for all Bt*N gate logits; f32 accumulation.
    logits = jnp.dot(x2, w_ref[...].astype(x.dtype),
                     preferred_element_type=jnp.float32) + b_ref[0]   # (Bt*N, 1)
    atom_w = jax.nn.sigmoid(logits)                 # EUP sigmoid, f32

    # Weighted node features: lane-broadcast multiply (VPU), then a cheap
    # per-graph sublane reduction over N.  Hidden under the feats DMA.
    weighted = (atom_w * x2.astype(jnp.float32)).reshape(bt, n, f)
    out_ref[...] = jnp.sum(weighted, axis=1).astype(out_ref.dtype)    # dense (Bt, F) store


def _choose_block_b(B, N, F, itemsize, target_bytes=4 << 20):
    """Graphs per grid step.

    - Multiple of 8 so the (Bt, F) output store is sublane-dense.
    - Sized so the feats tile is a few MiB: double-buffered it still fits the
      default scoped-VMEM limit on every generation (16 MiB v5e / 32 MiB
      v6e / 32 MiB-of-64 MiB v7x), while large enough to sit near the HBM
      roofline.
    - When B allows, keep >= 2 grid steps so the "parallel" batch axis can be
      sharded across v7x's two TensorCores.
    """
    per_graph = max(1, N * F * itemsize)
    bt = max(8, (target_bytes // per_graph) // 8 * 8)
    b_pad8 = ((B + 7) // 8) * 8
    if b_pad8 >= 16:
        half = (((b_pad8 // 2) + 7) // 8) * 8
        bt = min(bt, half)
    return int(min(bt, b_pad8))


def weighted_sum_and_max(feats, weight, bias, *, block_b=None):
    """feats: [B, N, F]; weight: [F, 1]; bias: [1] or scalar -> h_g_sum: [B, F]."""
    B, N, F = feats.shape
    bt = block_b if block_b is not None else _choose_block_b(
        B, N, F, jnp.dtype(feats.dtype).itemsize)

    # Pad the batch so it tiles evenly; zero-padded graphs contribute
    # sigmoid(bias) * 0 = 0 and are sliced off below.
    B_pad = pl.cdiv(B, bt) * bt
    if B_pad != B:
        feats = jnp.pad(feats, ((0, B_pad - B), (0, 0), (0, 0)))

    weight2d = weight.reshape(F, 1)
    bias1d = jnp.asarray(bias, dtype=jnp.float32).reshape(1)

    out = pl.pallas_call(
        _weighted_sum_kernel,
        out_shape=jax.ShapeDtypeStruct((B_pad, F), jnp.float32),
        grid_spec=pltpu.PrefetchScalarGridSpec(
            num_scalar_prefetch=0,
            grid=(B_pad // bt,),
            in_specs=[
                # Bt graphs' node features per grid step (multi-MiB tile).
                pl.BlockSpec((bt, N, F), lambda b: (b, 0, 0)),
                # Gating weight, VMEM-resident across the whole grid.
                pl.BlockSpec((F, 1), lambda b: (0, 0)),
                # Bias as an SMEM scalar (no extra VMEM DMA stream).
                pl.BlockSpec(memory_space=pltpu.MemorySpace.SMEM),
            ],
            # Sublane/lane-dense 2-D output block.
            out_specs=pl.BlockSpec((bt, F), lambda b: (b, 0)),
        ),
        compiler_params=pltpu.CompilerParams(
            dimension_semantics=("parallel",),
        ),
    )(feats, weight2d, bias1d)

    return out[:B]


def weighted_sum_and_max_ref(feats, weight, bias):
    """Pure-JAX reference of the PyTorch forward."""
    logits = jnp.einsum("bnf,fo->bno", feats, weight) + jnp.asarray(bias).reshape(1, 1, 1)
    atom_w = jax.nn.sigmoid(logits)                 # (B, N, 1)
    return jnp.sum(atom_w * feats, axis=1)          # (B, F)


if __name__ == "__main__":
    B, N, F = 16, 8, 32   # 16 graphs, 8 nodes each, in_feats=32 (grid of 2 blocks)

    key = jax.random.PRNGKey(0)
    k_feats, k_w, k_b = jax.random.split(key, 3)

    feats = jax.random.normal(k_feats, (B, N, F), dtype=jnp.float32)

    # Deterministic init of Linear(in_feats, 1), matching PyTorch's default
    # uniform(-1/sqrt(F), 1/sqrt(F)) scheme.
    bound = 1.0 / jnp.sqrt(jnp.float32(F))
    weight = jax.random.uniform(k_w, (F, 1), jnp.float32, -bound, bound)
    bias = jax.random.uniform(k_b, (1,), jnp.float32, -bound, bound)

    out = weighted_sum_and_max(feats, weight, bias)
    out = jax.block_until_ready(out)

    ref = weighted_sum_and_max_ref(feats, weight, bias)
    assert out.shape == (B, F)
    assert jnp.allclose(out, ref, atol=1e-5, rtol=1e-5), "mismatch vs reference"

    print("KERNEL_OK")
</pallas_src>

<mosaic_0001>
module attributes {stable_mosaic.version = 11 : i64} {
  func.func @_weighted_sum_kernel(%arg0: i32, %arg1: memref<8x8x32xf32, #tpu.memory_space<vmem>>, %arg2: memref<32x1xf32, #tpu.memory_space<vmem>>, %arg3: memref<1xf32, #tpu.memory_space<smem>>, %arg4: memref<8x32xf32, #tpu.memory_space<vmem>>) attributes {dimension_semantics = [#tpu.dimension_semantics<parallel>], iteration_bounds = array<i64: 2>, scalar_prefetch = 0 : i64, scratch_operands = 0 : i64, tpu.core_type = #tpu.core_type<tc>, window_params = [{transform_indices = @transform_0, window_bounds = array<i64: 8, 8, 32>}, {pipeline_mode = #tpu.pipeline_mode<synchronous>, transform_indices = @transform_1, window_bounds = array<i64: 32, 1>}, {transform_indices = @transform_2, window_bounds = array<i64: 1>}, {transform_indices = @transform_3, window_bounds = array<i64: 8, 32>}]} {
    %c0 = arith.constant 0 : index
    %c0_0 = arith.constant 0 : index
    %c0_1 = arith.constant 0 : index
    %0 = vector.load %arg1[%c0, %c0_0, %c0_1] : memref<8x8x32xf32, #tpu.memory_space<vmem>>, vector<8x8x32xf32>
    %1 = vector.shape_cast %0 : vector<8x8x32xf32> to vector<64x32xf32>
    %c0_2 = arith.constant 0 : index
    %c0_3 = arith.constant 0 : index
    %2 = vector.load %arg2[%c0_2, %c0_3] : memref<32x1xf32, #tpu.memory_space<vmem>>, vector<32x1xf32>
    %cst = arith.constant dense<0.000000e+00> : vector<64x1xf32>
    %3 = tpu.matmul %1, %2, %cst {dimension_numbers = #tpu.dot_dimension_numbers<[1], [0], [0], [1], [0, 0, 1, 1], [], []>} : vector<64x32xf32>, vector<32x1xf32>, vector<64x1xf32> -> vector<64x1xf32>
    %c0_4 = arith.constant 0 : index
    %4 = memref.load %arg3[%c0_4] : memref<1xf32, #tpu.memory_space<smem>>
    %5 = vector.broadcast %4 : f32 to vector<64x1xf32>
    %6 = arith.addf %3, %5 : vector<64x1xf32>
    %7 = arith.negf %6 : vector<64x1xf32>
    %8 = math.exp %7 : vector<64x1xf32>
    %cst_5 = arith.constant 1.000000e+00 : f32
    %9 = vector.broadcast %cst_5 : f32 to vector<64x1xf32>
    %10 = arith.addf %9, %8 : vector<64x1xf32>
    %11 = arith.divf %9, %10 : vector<64x1xf32>
    %12 = vector.broadcast %11 : vector<64x1xf32> to vector<64x32xf32>
    %13 = arith.mulf %12, %1 : vector<64x32xf32>
    %14 = vector.shape_cast %13 : vector<64x32xf32> to vector<8x8x32xf32>
    %cst_6 = arith.constant dense<0.000000e+00> : vector<8x32xf32>
    %15 = vector.multi_reduction <add>, %14, %cst_6 [1] : vector<8x8x32xf32> to vector<8x32xf32>
    %c0_7 = arith.constant 0 : index
    %c0_8 = arith.constant 0 : index
    %16 = vector.load %arg4[%c0_7, %c0_8] : memref<8x32xf32, #tpu.memory_space<vmem>>, vector<8x32xf32>
    tpu.vector_store %arg4[%c0_7, %c0_8], %15 {strides = array<i32>} : memref<8x32xf32, #tpu.memory_space<vmem>>, vector<8x32xf32>,
    return
  }
  func.func @transform_0(%arg0: i32) -> (i32, i32, i32) {
    %c0_i32 = arith.constant 0 : i32
    %c0_i32_0 = arith.constant 0 : i32
    %c0_i32_1 = arith.constant 0 : i32
    return %arg0, %c0_i32, %c0_i32_0 : i32, i32, i32
  }
  func.func @transform_1(%arg0: i32) -> (i32, i32) {
    %c0_i32 = arith.constant 0 : i32
    %c0_i32_0 = arith.constant 0 : i32
    %c0_i32_1 = arith.constant 0 : i32
    return %c0_i32, %c0_i32_0 : i32, i32
  }
  func.func @transform_2(%arg0: i32) -> i32 {
    %c0_i32 = arith.constant 0 : i32
    %c0_i32_0 = arith.constant 0 : i32
    return %c0_i32 : i32
  }
  func.func @transform_3(%arg0: i32) -> (i32, i32) {
    %c0_i32 = arith.constant 0 : i32
    %c0_i32_0 = arith.constant 0 : i32
    return %arg0, %c0_i32 : i32, i32
  }
}

</mosaic_0001>

<llo_original>
// kernel: tpu_custom_call.1
$region0: #{tpu_custom_call.1}
  #allocation0 [shape = 'u32[]', space=smem, size = 0x4, offset = 0x4, fixed_abs, tag = 'smem constant byte address 0x4 - core index']
  #allocation1 [shape = 'u32[144,128]{1,0:T(1,128)}', space=vmem, size = 0x12000, scoped, tag = 'internal scratch']
  #allocation2 [shape = 'f32[1]{0:T(128)S(6)}', space=smem, size = 0x200, scoped, tag = 'scoped memory for tpu_custom_call.1']
  %s0 = inlined_call_operand.hbm [shape: f32[16,8,32], index: 0, kind: input, shape index: {}]
  %s1 = inlined_call_operand.vmem [shape: f32[32,1], index: 1, kind: input, shape index: {}]
  %s2 = inlined_call_operand.<no memory space> [shape: f32[1], index: 2, kind: input, shape index: {}]
  %s3 = inlined_call_operand.hbm [shape: f32[16,32], index: 3, kind: output, shape index: {}]
  %s4 = sld [smem:[#allocation0]]
  $region49: #{tpu_custom_call.1} parent=0
    _
  %s6 = ssub.s32 1, %s4
  %s7 = scalar_select 0, %s6, %s4
  %8 = sst [smem:[#allocation2]] %s2
  $region1: #{tpu_custom_call.1} parent=0
    #allocation3 [shape = 'u8[65536]{0}', space=vmem, size = 0x10000, scoped, tag = 'input window, operand 0']
    #allocation4 [shape = 's32[2]{0}', space=sflag, size = 0x8, scoped, tag = 'scoped memory for tpu_custom_call.1']
    #allocation5 [shape = 's32[2]{0}', space=sflag, size = 0x8, scoped, tag = 'scoped memory for tpu_custom_call.1']
    #allocation6 [shape = 'u8[8192]{0}', space=vmem, size = 0x2000, scoped, tag = 'output window, operand 0']
    %9 = vsyncpa [#allocation4], 0
    %s10 = scalar_lea.sflag [#allocation4], 1
    %11 = vsyncpa %s10, 0
    %12 = vsyncpa [#allocation5], 0
    %s13 = scalar_lea.sflag [#allocation5], 1
    %14 = vsyncpa %s13, 0
    loop: start=0, step=1, limit=4
    $region2: #{tpu_custom_call.1} parent=1 // loop_pre_header
      _
    $region3: #{tpu_custom_call.1} parent=1 // loop_header
      %s16 = sphi 0, %s20
      %p17 = scmp.ge.s32.totalorder %s16, 4
      %s26 = sphi 0, %s28
      %s29 = sphi 0, %s26
      %s30 = sphi 0, %s29
      %s46 = sphi 0, %s30
      %s50 = sphi 0, %s50
      %s52 = sphi 0, %s50
      %s53 = sphi 0, %s52
      %s67 = sphi 0, %s53
      %s71 = sphi 0, %s71
      %s73 = sphi 0, %s71
      %s74 = sphi 0, %s73
      %s88 = sphi 0, %s74
      %s94 = sphi 0, %s96
      %s97 = sphi 0, %s94
      %s98 = sphi 0, %s97
      %s114 = sphi 0, %s98
    $region4: #{tpu_custom_call.1} parent=1 // loop_header_branch
      %19 = sbr.rel (%p17) target = $region8
    $region5: #{tpu_custom_call.1} parent=1 // loop_body
      %s21 = ssub.s32 %s16, 1
      %s22 = ssub.s32 %s16, 2
      %s23 = sadd.s32 %s16, 1
      %s24 = ssub.s32 %s16, %s23
      %p25 = scmp.eq.s32.totalorder %s24, 0
      %s27 = sadd.s32 %s26, 1
      %s28 = scalar_select %p25, %s26, %s27
      %p31 = pneg %p25
      %p32 = scmp.eq.s32.totalorder %s16, 1
      %p33 = por %p31, %p32
      %p34 = scmp.ne.s32.totalorder %s26, %s29
      %p35 = scmp.eq.s32.totalorder %s16, 0
      %p36 = por %p34, %p35
      %p37 = scmp.ne.s32.totalorder %s26, %s29
      %p38 = scmp.eq.s32.totalorder %s21, 1
      %p39 = por %p37, %p38
      %p40 = scmp.ne.s32.totalorder %s29, %s30
      %p41 = scmp.eq.s32.totalorder %s21, 0
      %p42 = por %p40, %p41
      %p43 = scmp.ne.s32.totalorder %s29, %s30
      %p44 = scmp.eq.s32.totalorder %s22, 1
      %p45 = por %p43, %p44
      %p47 = scmp.ne.s32.totalorder %s30, %s46
      %p48 = scmp.eq.s32.totalorder %s22, 0
      %p49 = por %p47, %p48
      %s51 = sadd.s32 %s50, 1
      %p54 = scmp.eq.s32.totalorder %s16, 1
      %p55 = scmp.ne.s32.totalorder %s50, %s52
      %p56 = scmp.eq.s32.totalorder %s16, 0
      %p57 = por %p55, %p56
      %p58 = scmp.ne.s32.totalorder %s50, %s52
      %p59 = scmp.eq.s32.totalorder %s21, 1
      %p60 = por %p58, %p59
      %p61 = scmp.ne.s32.totalorder %s52, %s53
      %p62 = scmp.eq.s32.totalorder %s21, 0
      %p63 = por %p61, %p62
      %p64 = scmp.ne.s32.totalorder %s52, %s53
      %p65 = scmp.eq.s32.totalorder %s22, 1
      %p66 = por %p64, %p65
      %p68 = scmp.ne.s32.totalorder %s53, %s67
      %p69 = scmp.eq.s32.totalorder %s22, 0
      %p70 = por %p68, %p69
      %s72 = sadd.s32 %s71, 1
      %p75 = scmp.eq.s32.totalorder %s16, 1
      %p76 = scmp.ne.s32.totalorder %s71, %s73
      %p77 = scmp.eq.s32.totalorder %s16, 0
      %p78 = por %p76, %p77
      %p79 = scmp.ne.s32.totalorder %s71, %s73
      %p80 = scmp.eq.s32.totalorder %s21, 1
      %p81 = por %p79, %p80
      %p82 = scmp.ne.s32.totalorder %s73, %s74
      %p83 = scmp.eq.s32.totalorder %s21, 0
      %p84 = por %p82, %p83
      %p85 = scmp.ne.s32.totalorder %s73, %s74
      %p86 = scmp.eq.s32.totalorder %s22, 1
      %p87 = por %p85, %p86
      %p89 = scmp.ne.s32.totalorder %s74, %s88
      %p90 = scmp.eq.s32.totalorder %s22, 0
      %p91 = por %p89, %p90
      %s92 = ssub.s32 %s16, %s23
      %p93 = scmp.eq.s32.totalorder %s92, 0
      %s95 = sadd.s32 %s94, 1
      %s96 = scalar_select %p93, %s94, %s95
      %p99 = pneg %p93
      %p100 = scmp.eq.s32.totalorder %s16, 1
      %p101 = por %p99, %p100
      %p102 = scmp.ne.s32.totalorder %s94, %s97
      %p103 = scmp.eq.s32.totalorder %s16, 0
      %p104 = por %p102, %p103
      %p105 = scmp.ne.s32.totalorder %s94, %s97
      %p106 = scmp.eq.s32.totalorder %s21, 1
      %p107 = por %p105, %p106
      %p108 = scmp.ne.s32.totalorder %s97, %s98
      %p109 = scmp.eq.s32.totalorder %s21, 0
      %p110 = por %p108, %p109
      %p111 = scmp.ne.s32.totalorder %s97, %s98
      %p112 = scmp.eq.s32.totalorder %s22, 1
      %p113 = por %p111, %p112
      %p115 = scmp.ne.s32.totalorder %s98, %s114
      %p116 = scmp.eq.s32.totalorder %s22, 0
      %p117 = por %p115, %p116
      %p118 = scmp.le.s32.totalorder 1, %s16
      %p119 = scmp.lt.s32.totalorder %s16, 3
      %p120 = pnand %p118, %p119
      %p121 = pneg %p120
      // Predicated region
      $region9: #{tpu_custom_call.1} parent=5 // pred_check
        _
      $region10: #{tpu_custom_call.1} parent=5 // pred_check_branch
        %123 = sbr.rel (%p120) target = $region12
      $region11: #{tpu_custom_call.1} parent=5 // pred_region
        %s124 = ssub.s32 %s16, 1
        // Predicated region
        $region13: #{tpu_custom_call.1} parent=11 // pred_check
          %p125 = pneg %p63
        $region14: #{tpu_custom_call.1} parent=11 // pred_check_branch
          %127 = sbr.rel (%p125) target = $region16
        $region15: #{tpu_custom_call.1} parent=11 // pred_region
          _
        $region16: #{tpu_custom_call.1} parent=11 // pred_fallthru
          _
        // Predicated region
        $region17: #{tpu_custom_call.1} parent=11 // pred_check
          %p128 = pneg %p84
        $region18: #{tpu_custom_call.1} parent=11 // pred_check_branch
          %130 = sbr.rel (%p128) target = $region20
        $region19: #{tpu_custom_call.1} parent=11 // pred_region
          _
        $region20: #{tpu_custom_call.1} parent=11 // pred_fallthru
          _
      $region12: #{tpu_custom_call.1} parent=5 // pred_fallthru
        _
      %p131 = scmp.lt.s32.totalorder %s16, 2
      // Predicated region
      $region21: #{tpu_custom_call.1} parent=5 // pred_check
        %p132 = pneg %p131
      $region22: #{tpu_custom_call.1} parent=5 // pred_check_branch
        %134 = sbr.rel (%p132) target = $region24
      $region23: #{tpu_custom_call.1} parent=5 // pred_region
        // Predicated region
        $region25: #{tpu_custom_call.1} parent=23 // pred_check
          %p135 = pneg %p36
        $region26: #{tpu_custom_call.1} parent=23 // pred_check_branch
          %137 = sbr.rel (%p135) target = $region28
        $region27: #{tpu_custom_call.1} parent=23 // pred_region
          %s138 = sand.u32 %s26, 1
          %s139 = scalar_lea.sflag [#allocation4], %s138
          %s140 = sand.u32 %s26, 1
          %s141 = smul.addr %s140, 64
          %s142 = scalar_lea.vmem [#allocation3], %s141
          %s143 = smul.u32 8, %s16
          %s145 = ssub.s32 1024, 1024
          %146 = vsyncadd %s139, %s145
          %s147 = smul.addr %s143, 128
          %s148 = scalar_lea.hbm %s0, %s147
          %s149 = sshll.u32 %s142, 4
          %s150 = int_to_ptr.vmem [resolvable:$true] %s149
          %155 = dma.hbm_to_vmem [thread:$0]  %s148, 1024, %s150, %s139, 128, 128, 8
        $region28: #{tpu_custom_call.1} parent=23 // pred_fallthru
          _
      $region24: #{tpu_custom_call.1} parent=5 // pred_fallthru
        _
      %p156 = scmp.le.s32.totalorder 1, %s16
      %p157 = scmp.lt.s32.totalorder %s16, 3
      %p158 = pnand %p156, %p157
      %p159 = pneg %p158
      // Predicated region
      $region29: #{tpu_custom_call.1} parent=5 // pred_check
        _
      $region30: #{tpu_custom_call.1} parent=5 // pred_check_branch
        %161 = sbr.rel (%p158) target = $region32
      $region31: #{tpu_custom_call.1} parent=5 // pred_region
        %s162 = ssub.s32 %s16, 1
        %s163 = sand.u32 %s29, 1
        %s164 = scalar_lea.sflag [#allocation4], %s163
        %s165 = sand.u32 %s29, 1
        %s166 = smul.addr %s165, 64
        %s167 = scalar_lea.vmem [#allocation3], %s166
        // Predicated region
        $region33: #{tpu_custom_call.1} parent=31 // pred_check
          %p168 = pneg %p42
        $region34: #{tpu_custom_call.1} parent=31 // pred_check_branch
          %170 = sbr.rel (%p168) target = $region36
        $region35: #{tpu_custom_call.1} parent=31 // pred_region
          %171 = dma.done %s164, 1024
        $region36: #{tpu_custom_call.1} parent=31 // pred_fallthru
          _
        %s172 = sand.u32 %s29, 1
        %s173 = scalar_lea.sflag [#allocation4], %s172
        %s174 = sand.u32 %s29, 1
        %s175 = smul.addr %s174, 64
        %s176 = scalar_lea.vmem [#allocation3], %s175
        %p177 = pneg %p42
        %p178 = pneg %p39
        %p179 = pneg %p63
        %p180 = pneg %p60
        %p181 = pneg %p84
        %p182 = pneg %p81
        %p183 = pneg %p110
        %p184 = pneg %p107
        %s185 = sand.u32 %s97, 1
        %s186 = scalar_lea.sflag [#allocation5], %s185
        %s187 = sand.u32 %s97, 1
        %s188 = smul.addr %s187, 8
        %s189 = scalar_lea.vmem [#allocation6], %s188
        %s190 = smul.u32 8, %s21
        %v191 = vld [vmem:[%s167] sm:$0xff]
        %v192 = vld [vmem:[%s167 + $0x8] sm:$0xff]
        %v193 = vld [vmem:[%s167 + $0x10] sm:$0xff]
        %v194 = vld [vmem:[%s167 + $0x18] sm:$0xff]
        %v195 = vld [vmem:[%s167 + $0x20] sm:$0xff]
        %v196 = vld [vmem:[%s167 + $0x28] sm:$0xff]
        %v197 = vld [vmem:[%s167 + $0x30] sm:$0xff]
        %v198 = vld [vmem:[%s167 + $0x38] sm:$0xff]
        %v199 = vld [vmem:[%s1] sm:$0xff]
        %v200 = vld [vmem:[%s1 + $0x8] sm:$0xff]
        %v201 = vld [vmem:[%s1 + $0x10] sm:$0xff]
        %v202 = vld [vmem:[%s1 + $0x18] sm:$0xff]
        %s203 = sld [smem:[#allocation2]]
        %v204 = vstv %s203
        %vm205 = vcmask 261120
        %v207 = vsel %vm205, %v191, 0
        %v210 = vsel %vm205, %v192, 0
        %v213 = vsel %vm205, %v193, 0
        %v216 = vsel %vm205, %v194, 0
        %v219 = vsel %vm205, %v195, 0
        %v222 = vsel %vm205, %v196, 0
        %v225 = vsel %vm205, %v197, 0
        %v228 = vsel %vm205, %v198, 0
        %230 = vmatprep.subr.mxu0 0.0
        %231 = vmatpush1.msra.mxu0 %v199
        %232 = vmatprep.subr.mxu0 0.0
        %233 = vmatpush1.msra.mxu0 %v200
        %234 = vmatprep.subr.mxu0 0.0
        %235 = vmatpush1.msra.mxu0 %v201
        %236 = vmatprep.subr.mxu0 0.0
        %237 = vmatpush1.msra.mxu0 %v202
        %238 = vmatprep.subr.mxu0 0.0
        %239 = vmatpush1.msra.mxu0 0.0
        %240 = vmatprep.subr.mxu0 0.0
        %241 = vmatpush1.msra.mxu0 0.0
        %242 = vmatprep.subr.mxu0 0.0
        %243 = vmatpush1.msra.mxu0 0.0
        %244 = vmatprep.subr.mxu0 0.0
        %245 = vmatpush1.msra.mxu0 0.0
        %246 = vmatprep.subr.mxu0 0.0
        %247 = vmatpush1.msra.mxu0 0.0
        %248 = vmatprep.subr.mxu0 0.0
        %249 = vmatpush1.msra.mxu0 0.0
        %250 = vmatprep.subr.mxu0 0.0
        %251 = vmatpush1.msra.mxu0 0.0
        %252 = vmatprep.subr.mxu0 0.0
        %253 = vmatpush1.msra.mxu0 0.0
        %254 = vmatprep.subr.mxu0 0.0
        %255 = vmatpush1.msra.mxu0 0.0
        %256 = vmatprep.subr.mxu0 0.0
        %257 = vmatpush1.msra.mxu0 0.0
        %258 = vmatprep.subr.mxu0 0.0
        %259 = vmatpush1.msra.mxu0 0.0
        %260 = vmatprep.subr.mxu0 0.0
        %261 = vmatpush1.msra.mxu0 0.0
        %262 = vmatprep.subr.mxu0 0.0
        %263 = vmatpush1.msra.mxu0 0.0
        %264 = vmatprep.subr.mxu0 0.0
        %265 = vmatpush1.msra.mxu0 0.0
        %266 = vmatprep.subr.mxu0 0.0
        %267 = vmatpush1.msra.mxu0 0.0
        %268 = vmatprep.subr.mxu0 0.0
        %269 = vmatpush1.msra.mxu0 0.0
        %270 = vmatprep.subr.mxu0 0.0
        %271 = vmatpush1.msra.mxu0 0.0
        %272 = vmatprep.subr.mxu0 0.0
        %273 = vmatpush1.msra.mxu0 0.0
        %274 = vmatprep.subr.mxu0 0.0
        %275 = vmatpush1.msra.mxu0 0.0
        %276 = vmatprep.subr.mxu0 0.0
        %277 = vmatpush1.msra.mxu0 0.0
        %278 = vmatprep.subr.mxu0 0.0
        %279 = vmatpush1.msra.mxu0 0.0
        %280 = vmatprep.subr.mxu0 0.0
        %281 = vmatpush1.msra.mxu0 0.0
        %282 = vmatprep.subr.mxu0 0.0
        %283 = vmatpush1.msra.mxu0 0.0
        %284 = vmatprep.subr.mxu0 0.0
        %285 = vmatpush1.msra.mxu0 0.0
        %286 = vmatprep.subr.mxu0 0.0
        %287 = vmatpush1.msra.mxu0 0.0
        %288 = vmatprep.subr.mxu0 0.0
        %289 = vmatpush1.msra.mxu0 0.0
        %290 = vmatprep.subr.mxu0 0.0
        %291 = vmatpush1.msra.mxu0 0.0
        %292 = vmatprep.subr.mxu0 0.0
        %293 = vmatpush1.msra.mxu0 0.0
        %294 = vmatprep.mubr.f32.mxu0 0.0
        %295 = vmatmul.mubr.f32.gmra.mrb[0].mxu0 %v207
        %v296 = vpop.f32.mrb[0].mxu0
        %v297 = vadd.f32 %v204, %v296
        %v298 = vpop.f32.mrb[0].mxu0
        %299 = vmatprep.mubr.f32.mxu0 0.0
        %300 = vmatmul.mubr.f32.gmra.mrb[0].mxu0 %v210
        %v301 = vpop.f32.mrb[0].mxu0
        %v302 = vadd.f32 %v204, %v301
        %v303 = vpop.f32.mrb[0].mxu0
        %304 = vmatprep.mubr.f32.mxu0 0.0
        %305 = vmatmul.mubr.f32.gmra.mrb[0].mxu0 %v213
        %v306 = vpop.f32.mrb[0].mxu0
        %v307 = vadd.f32 %v204, %v306
        %v308 = vpop.f32.mrb[0].mxu0
        %309 = vmatprep.mubr.f32.mxu0 0.0
        %310 = vmatmul.mubr.f32.gmra.mrb[0].mxu0 %v216
        %v311 = vpop.f32.mrb[0].mxu0
        %v312 = vadd.f32 %v204, %v311
        %v313 = vpop.f32.mrb[0].mxu0
        %314 = vmatprep.mubr.f32.mxu0 0.0
        %315 = vmatmul.mubr.f32.gmra.mrb[0].mxu0 %v219
        %v316 = vpop.f32.mrb[0].mxu0
        %v317 = vadd.f32 %v204, %v316
        %v318 = vpop.f32.mrb[0].mxu0
        %319 = vmatprep.mubr.f32.mxu0 0.0
        %320 = vmatmul.mubr.f32.gmra.mrb[0].mxu0 %v222
        %v321 = vpop.f32.mrb[0].mxu0
        %v322 = vadd.f32 %v204, %v321
        %v323 = vpop.f32.mrb[0].mxu0
        %324 = vmatprep.mubr.f32.mxu0 0.0
        %325 = vmatmul.mubr.f32.gmra.mrb[0].mxu0 %v225
        %v326 = vpop.f32.mrb[0].mxu0
        %v327 = vadd.f32 %v204, %v326
        %v328 = vpop.f32.mrb[0].mxu0
        %329 = vmatprep.mubr.f32.mxu0 0.0
        %330 = vmatmul.mubr.f32.gmra.mrb[0].mxu0 %v228
        %v331 = vpop.f32.mrb[0].mxu0
        %v332 = vadd.f32 %v204, %v331
        %v333 = vpop.f32.mrb[0].mxu0
        %334 = vdwg.mxu0
        %v335 = vxor.u32 %v297, 2147483648
        %v336 = vxor.u32 %v302, 2147483648
        %v337 = vxor.u32 %v307, 2147483648
        %v338 = vxor.u32 %v312, 2147483648
        %v339 = vxor.u32 %v317, 2147483648
        %v340 = vxor.u32 %v322, 2147483648
        %v341 = vxor.u32 %v327, 2147483648
        %v342 = vxor.u32 %v332, 2147483648
        %v343 = vmul.f32 %v335, 1.442695
        %v344 = vpow.pop %v343
        %v345 = vmul.f32 %v336, 1.442695
        %v346 = vpow.pop %v345
        %v347 = vmul.f32 %v337, 1.442695
        %v348 = vpow.pop %v347
        %v349 = vmul.f32 %v338, 1.442695
        %v350 = vpow.pop %v349
        %v351 = vmul.f32 %v339, 1.442695
        %v352 = vpow.pop %v351
        %v353 = vmul.f32 %v340, 1.442695
        %v354 = vpow.pop %v353
        %v355 = vmul.f32 %v341, 1.442695
        %v356 = vpow.pop %v355
        %v357 = vmul.f32 %v342, 1.442695
        %v358 = vpow.pop %v357
        %v359 = vadd.f32 %v344, 1.0
        %v360 = vadd.f32 %v346, 1.0
        %v361 = vadd.f32 %v348, 1.0
        %v362 = vadd.f32 %v350, 1.0
        %v363 = vadd.f32 %v352, 1.0
        %v364 = vadd.f32 %v354, 1.0
        %v365 = vadd.f32 %v356, 1.0
        %v366 = vadd.f32 %v358, 1.0
        %v367 = vrcp.pop %v359
        %v368 = vmul.f32 1.0, %v367
        %v369 = vrcp.pop %v360
        %v370 = vmul.f32 1.0, %v369
        %v371 = vrcp.pop %v361
        %v372 = vmul.f32 1.0, %v371
        %v373 = vrcp.pop %v362
        %v374 = vmul.f32 1.0, %v373
        %v375 = vrcp.pop %v363
        %v376 = vmul.f32 1.0, %v375
        %v377 = vrcp.pop %v364
        %v378 = vmul.f32 1.0, %v377
        %v379 = vrcp.pop %v365
        %v380 = vmul.f32 1.0, %v379
        %v381 = vrcp.pop %v366
        %v382 = vmul.f32 1.0, %v381
        %384 = vset.pattern.permute.xlu0 0
        %385 = vperm.xlu0 %384, %v368
        %v386 = vpop.permute.xlu0 %385
        %389 = vset.pattern.permute.xlu0 0
        %390 = vperm.xlu0 %389, %v370
        %v391 = vpop.permute.xlu0 %390
        %394 = vset.pattern.permute.xlu0 0
        %395 = vperm.xlu0 %394, %v372
        %v396 = vpop.permute.xlu0 %395
        %399 = vset.pattern.permute.xlu0 0
        %400 = vperm.xlu0 %399, %v374
        %v401 = vpop.permute.xlu0 %400
        %404 = vset.pattern.permute.xlu0 0
        %405 = vperm.xlu0 %404, %v376
        %v406 = vpop.permute.xlu0 %405
        %409 = vset.pattern.permute.xlu0 0
        %410 = vperm.xlu0 %409, %v378
        %v411 = vpop.permute.xlu0 %410
        %414 = vset.pattern.permute.xlu0 0
        %415 = vperm.xlu0 %414, %v380
        %v416 = vpop.permute.xlu0 %415
        %419 = vset.pattern.permute.xlu0 0
        %420 = vperm.xlu0 %419, %v382
        %v421 = vpop.permute.xlu0 %420
        %v423 = vmul.f32 %v386, %v191
        %v424 = vmul.f32 %v391, %v192
        %v425 = vmul.f32 %v396, %v193
        %v426 = vmul.f32 %v401, %v194
        %v427 = vmul.f32 %v406, %v195
        %v428 = vmul.f32 %v411, %v196
        %v429 = vmul.f32 %v416, %v197
        %v430 = vmul.f32 %v421, %v198
        %v431 = vsel %vm205, %v423, 0.0
        %v432 = vrot.slane %v431, 4
        %v433 = vadd.f32 %v431, %v432
        %v434 = vrot.slane %v433, 2
        %v435 = vadd.f32 %v433, %v434
        %v436 = vrot.slane %v435, 1
        %v437 = vadd.f32 %v435, %v436
        %v438 = vsel %vm205, %v424, 0.0
        %v439 = vrot.slane %v438, 4
        %v440 = vadd.f32 %v438, %v439
        %v441 = vrot.slane %v440, 2
        %v442 = vadd.f32 %v440, %v441
        %v443 = vrot.slane %v442, 1
        %v444 = vadd.f32 %v442, %v443
        %v445 = vsel %vm205, %v425, 0.0
        %v446 = vrot.slane %v445, 4
        %v447 = vadd.f32 %v445, %v446
        %v448 = vrot.slane %v447, 2
        %v449 = vadd.f32 %v447, %v448
        %v450 = vrot.slane %v449, 1
        %v451 = vadd.f32 %v449, %v450
        %v452 = vsel %vm205, %v426, 0.0
        %v453 = vrot.slane %v452, 4
        %v454 = vadd.f32 %v452, %v453
        %v455 = vrot.slane %v454, 2
        %v456 = vadd.f32 %v454, %v455
        %v457 = vrot.slane %v456, 1
        %v458 = vadd.f32 %v456, %v457
        %v459 = vsel %vm205, %v427, 0.0
        %v460 = vrot.slane %v459, 4
        %v461 = vadd.f32 %v459, %v460
        %v462 = vrot.slane %v461, 2
        %v463 = vadd.f32 %v461, %v462
        %v464 = vrot.slane %v463, 1
        %v465 = vadd.f32 %v463, %v464
        %v466 = vsel %vm205, %v428, 0.0
        %v467 = vrot.slane %v466, 4
        %v468 = vadd.f32 %v466, %v467
        %v469 = vrot.slane %v468, 2
        %v470 = vadd.f32 %v468, %v469
        %v471 = vrot.slane %v470, 1
        %v472 = vadd.f32 %v470, %v471
        %v473 = vsel %vm205, %v429, 0.0
        %v474 = vrot.slane %v473, 4
        %v475 = vadd.f32 %v473, %v474
        %v476 = vrot.slane %v475, 2
        %v477 = vadd.f32 %v475, %v476
        %v478 = vrot.slane %v477, 1
        %v479 = vadd.f32 %v477, %v478
        %v480 = vsel %vm205, %v430, 0.0
        %v481 = vrot.slane %v480, 4
        %v482 = vadd.f32 %v480, %v481
        %v483 = vrot.slane %v482, 2
        %v484 = vadd.f32 %v482, %v483
        %v485 = vrot.slane %v484, 1
        %v486 = vadd.f32 %v484, %v485
        %vm495 = vcmask 1041409
        %v496 = vsel %vm495, %v444, %v437
        %vm497 = vcmask 1042434
        %v498 = vsel %vm497, %v451, %v496
        %vm499 = vcmask 1043459
        %v500 = vsel %vm499, %v458, %v498
        %vm501 = vcmask 1044484
        %v502 = vsel %vm501, %v465, %v500
        %vm503 = vcmask 1045509
        %v504 = vsel %vm503, %v472, %v502
        %vm505 = vcmask 1046534
        %v506 = vsel %vm505, %v479, %v504
        %vm507 = vcmask 1047559
        %v508 = vsel %vm507, %v486, %v506
        %510 = vst.msk [vmem:[%s189] sm:$0xff] %vm205, %v508
        %s511 = sand.u32 %s97, 1
        %s512 = scalar_lea.sflag [#allocation5], %s511
        %s513 = sand.u32 %s97, 1
        %s514 = smul.addr %s513, 8
        %s515 = scalar_lea.vmem [#allocation6], %s514
        // Predicated region
        $region37: #{tpu_custom_call.1} parent=31 // pred_check
          %p516 = pneg %p107
        $region38: #{tpu_custom_call.1} parent=31 // pred_check_branch
          %518 = sbr.rel (%p516) target = $region40
        $region39: #{tpu_custom_call.1} parent=31 // pred_region
          %s520 = ssub.s32 128, 128
          %521 = vsyncadd %s512, %s520
          %s522 = smul.addr %s21, 128
          %s523 = scalar_lea.hbm %s3, %s522
          %s525 = sshll.u32 %s515, 4
          %s526 = int_to_ptr.vmem [resolvable:$true] %s525
          %528 = dma.vmem_to_hbm [thread:$0]  %s526, 128, %s523, %s512
        $region40: #{tpu_custom_call.1} parent=31 // pred_fallthru
          _
      $region32: #{tpu_custom_call.1} parent=5 // pred_fallthru
        _
      %p529 = scmp.le.s32.totalorder 2, %s16
      // Predicated region
      $region41: #{tpu_custom_call.1} parent=5 // pred_check
        %p530 = pneg %p529
      $region42: #{tpu_custom_call.1} parent=5 // pred_check_branch
        %532 = sbr.rel (%p530) target = $region44
      $region43: #{tpu_custom_call.1} parent=5 // pred_region
        %s533 = ssub.s32 %s16, 2
        // Predicated region
        $region45: #{tpu_custom_call.1} parent=43 // pred_check
          %p534 = pneg %p113
        $region46: #{tpu_custom_call.1} parent=43 // pred_check_branch
          %536 = sbr.rel (%p534) target = $region48
        $region47: #{tpu_custom_call.1} parent=43 // pred_region
          %s537 = sand.u32 %s98, 1
          %s538 = scalar_lea.sflag [#allocation5], %s537
          %s539 = sand.u32 %s98, 1
          %s540 = smul.addr %s539, 8
          %s541 = scalar_lea.vmem [#allocation6], %s540
          %542 = dma.done %s538, 128
        $region48: #{tpu_custom_call.1} parent=43 // pred_fallthru
          _
      $region44: #{tpu_custom_call.1} parent=5 // pred_fallthru
        _
    $region6: #{tpu_custom_call.1} parent=1 // loop_footer
      %s20 = sadd.s32 1, %s16
    $region7: #{tpu_custom_call.1} parent=1 // loop_footer_branch
      %15 = sbr.rel target = $region3
    $region8: #{tpu_custom_call.1} parent=1 // loop_exit
      _
    %543 = vsyncpa [#allocation4], 1
    %s544 = scalar_lea.sflag [#allocation4], 1
    %545 = vsyncpa %s544, 1
    %546 = vsyncpa [#allocation5], 1
    %s547 = scalar_lea.sflag [#allocation5], 1
    %548 = vsyncpa %s547, 1

</llo_original>
